<compile_context>
chip_gen: v6e
topology: v6e:2x2x1
jax: 0.10.0
libtpu: 0.0.40
codegen_flags: <defaults>
</compile_context>

<pallas_src>
import functools

import jax
import jax.numpy as jnp
from jax.experimental import pallas as pl
from jax.experimental.pallas import tpu as pltpu

MAX_LOGSTD = 10.0


def _round_up(n, m):
    return ((n + m - 1) // m) * m


def _pad2(a, rows, cols):
    r, c = a.shape
    return jnp.pad(a, ((0, rows - r), (0, cols - c)))


def _make_kernel(dp, matmul_dtype):
    """dp = padded head width (multiple of 128)."""

    def kernel(x_ref, eps_ref, w1_ref, b1_ref, w2_ref, b2_ref, wh_ref, bh_ref,
               out_ref):
        x = x_ref[...]

        # Layer 1: Linear + ReLU (f32 accumulate on MXU)
        h1 = jnp.dot(x, w1_ref[...], preferred_element_type=jnp.float32)
        h1 = jnp.maximum(h1 + b1_ref[...], 0.0)

        # Layer 2: Linear + ReLU
        h2 = jnp.dot(h1.astype(matmul_dtype), w2_ref[...],
                     preferred_element_type=jnp.float32)
        h2 = jnp.maximum(h2 + b2_ref[...], 0.0)

        # Fused heads: one matmul producing [mu | logstd] (lane-dense, 2*dp wide)
        heads = jnp.dot(h2.astype(matmul_dtype), wh_ref[...],
                        preferred_element_type=jnp.float32) + bh_ref[...]
        mu = heads[:, 0:dp]
        logstd = jnp.minimum(heads[:, dp:2 * dp], MAX_LOGSTD)  # clamp(max=10)

        # reparametrize: z = mu + eps * exp(logstd)   (exp runs on the EUP)
        z = mu + eps_ref[...] * jnp.exp(logstd)

        # Single packed, lane-dense output: [ z | mu | logstd ]
        out_ref[:, 0:dp] = z
        out_ref[:, dp:2 * dp] = mu
        out_ref[:, 2 * dp:3 * dp] = logstd

    return kernel


def gvae_mlp_forward(x, eps, params, *, tile_n=256, matmul_dtype=jnp.float32):
    """Fused GVAE-MLP encoder forward. Returns (z, mu, logstd)."""
    w1, b1, w2, b2, wmu, bmu, wls, bls = params
    N, in_dims = x.shape
    hid1 = w1.shape[1]
    hid2 = w2.shape[1]
    out_dims = wmu.shape[1]

    # Pad all feature dims to 128-lane multiples (zero padding is exact).
    fp = _round_up(in_dims, 128)
    h1p = _round_up(hid1, 128)
    h2p = _round_up(hid2, 128)
    dp = _round_up(out_dims, 128)

    # Row tile: large for big graphs, shrunk (to a multiple of 8) for tiny N.
    tile = min(tile_n, _round_up(N, 8))
    np_rows = _round_up(N, tile)

    # Pad / cast inputs and parameters in the wrapper (plain XLA ops).
    x_p = _pad2(x.astype(matmul_dtype), np_rows, fp)
    eps_p = _pad2(eps.astype(jnp.float32), np_rows, dp)

    w1_p = _pad2(w1.astype(matmul_dtype), fp, h1p)
    w2_p = _pad2(w2.astype(matmul_dtype), h1p, h2p)
    b1_p = _pad2(b1.reshape(1, -1).astype(jnp.float32), 1, h1p)
    b2_p = _pad2(b2.reshape(1, -1).astype(jnp.float32), 1, h2p)

    # Fuse the two heads into one [h2p, 2*dp] weight (and [1, 2*dp] bias).
    wh_p = jnp.concatenate(
        [_pad2(wmu.astype(matmul_dtype), h2p, dp),
         _pad2(wls.astype(matmul_dtype), h2p, dp)], axis=1)
    bh_p = jnp.concatenate(
        [_pad2(bmu.reshape(1, -1).astype(jnp.float32), 1, dp),
         _pad2(bls.reshape(1, -1).astype(jnp.float32), 1, dp)], axis=1)

    grid = (np_rows // tile,)

    def rows(cols):
        return pl.BlockSpec((tile, cols), lambda i: (i, 0))

    def full(shape):
        return pl.BlockSpec(shape, lambda i: (0, 0))

    packed = pl.pallas_call(
        _make_kernel(dp, matmul_dtype),
        out_shape=jax.ShapeDtypeStruct((np_rows, 3 * dp), jnp.float32),
        grid_spec=pltpu.PrefetchScalarGridSpec(
            num_scalar_prefetch=0,
            grid=grid,
            in_specs=[
                rows(fp),              # x
                rows(dp),              # eps
                full((fp, h1p)),       # W1
                full((1, h1p)),        # b1
                full((h1p, h2p)),      # W2
                full((1, h2p)),        # b2
                full((h2p, 2 * dp)),   # [Wmu | Wls]
                full((1, 2 * dp)),     # [bmu | bls]
            ],
            out_specs=pl.BlockSpec((tile, 3 * dp), lambda i: (i, 0)),
        ),
        compiler_params=pltpu.CompilerParams(
            dimension_semantics=("parallel",)),
    )(x_p, eps_p, w1_p, b1_p, w2_p, b2_p, wh_p, bh_p)

    z = packed[:N, 0:out_dims]
    mu = packed[:N, dp:dp + out_dims]
    logstd = packed[:N, 2 * dp:2 * dp + out_dims]
    return z, mu, logstd


def _reference(x, eps, params):
    w1, b1, w2, b2, wmu, bmu, wls, bls = params
    h1 = jnp.maximum(x @ w1 + b1, 0.0)
    h2 = jnp.maximum(h1 @ w2 + b2, 0.0)
    mu = h2 @ wmu + bmu
    logstd = jnp.minimum(h2 @ wls + bls, MAX_LOGSTD)
    z = mu + eps * jnp.exp(logstd)
    return z, mu, logstd


if __name__ == "__main__":
    # Small shapes consistent with the module: N nodes with in_dims features.
    N, in_dims, hid1, hid2, out_dims = 16, 12, 32, 16, 8

    key = jax.random.PRNGKey(0)
    kx, keps, k1, k2, k3, k4 = jax.random.split(key, 6)

    x = jax.random.normal(kx, (N, in_dims), dtype=jnp.float32)
    eps = jax.random.normal(keps, (N, out_dims), dtype=jnp.float32)

    def init_linear(k, fan_in, fan_out):
        scale = (2.0 / (fan_in + fan_out)) ** 0.5
        w = scale * jax.random.normal(k, (fan_in, fan_out), dtype=jnp.float32)
        b = jnp.zeros((1, fan_out), dtype=jnp.float32)
        return w, b

    w1, b1 = init_linear(k1, in_dims, hid1)
    w2, b2 = init_linear(k2, hid1, hid2)
    wmu, bmu = init_linear(k3, hid2, out_dims)
    wls, bls = init_linear(k4, hid2, out_dims)
    params = (w1, b1, w2, b2, wmu, bmu, wls, bls)

    z, mu, logstd = gvae_mlp_forward(x, eps, params, tile_n=256)
    jax.block_until_ready((z, mu, logstd))

    assert z.shape == (N, out_dims)
    assert mu.shape == (N, out_dims)
    assert logstd.shape == (N, out_dims)

    z_ref, mu_ref, ls_ref = _reference(x, eps, params)
    assert jnp.allclose(z, z_ref, atol=1e-4, rtol=1e-4)
    assert jnp.allclose(mu, mu_ref, atol=1e-4, rtol=1e-4)
    assert jnp.allclose(logstd, ls_ref, atol=1e-4, rtol=1e-4)

    # TODO(synk): the GCN message-passing / edge_index aggregation of
    # Encoder_Datasets_Publications_GCN is not available in the spec; the
    # encoder is implemented as the assumed 2-layer MLP + (mu, logstd) heads.
    # TODO(synk): InnerProductDecoder / recon_loss / kl_loss are not part of
    # forward(); only encode + reparametrize is implemented. eps is sampled
    # host-side (torch.randn_like equivalent) rather than via pltpu PRNG to
    # keep the correctness check deterministic.
    print("KERNEL_OK")
</pallas_src>

<mosaic_0001>
module attributes {stable_mosaic.version = 11 : i64} {
  func.func @kernel(%arg0: i32, %arg1: memref<16x128xf32, #tpu.memory_space<vmem>>, %arg2: memref<16x128xf32, #tpu.memory_space<vmem>>, %arg3: memref<128x128xf32, #tpu.memory_space<vmem>>, %arg4: memref<1x128xf32, #tpu.memory_space<vmem>>, %arg5: memref<128x128xf32, #tpu.memory_space<vmem>>, %arg6: memref<1x128xf32, #tpu.memory_space<vmem>>, %arg7: memref<128x256xf32, #tpu.memory_space<vmem>>, %arg8: memref<1x256xf32, #tpu.memory_space<vmem>>, %arg9: memref<16x384xf32, #tpu.memory_space<vmem>>) attributes {dimension_semantics = [#tpu.dimension_semantics<parallel>], iteration_bounds = array<i64: 1>, scalar_prefetch = 0 : i64, scratch_operands = 0 : i64, tpu.core_type = #tpu.core_type<tc>, window_params = [{transform_indices = @transform_0, window_bounds = array<i64: 16, 128>}, {transform_indices = @transform_1, window_bounds = array<i64: 16, 128>}, {pipeline_mode = #tpu.pipeline_mode<synchronous>, transform_indices = @transform_2, window_bounds = array<i64: 128, 128>}, {pipeline_mode = #tpu.pipeline_mode<synchronous>, transform_indices = @transform_3, window_bounds = array<i64: 1, 128>}, {pipeline_mode = #tpu.pipeline_mode<synchronous>, transform_indices = @transform_4, window_bounds = array<i64: 128, 128>}, {pipeline_mode = #tpu.pipeline_mode<synchronous>, transform_indices = @transform_5, window_bounds = array<i64: 1, 128>}, {pipeline_mode = #tpu.pipeline_mode<synchronous>, transform_indices = @transform_6, window_bounds = array<i64: 128, 256>}, {pipeline_mode = #tpu.pipeline_mode<synchronous>, transform_indices = @transform_7, window_bounds = array<i64: 1, 256>}, {transform_indices = @transform_8, window_bounds = array<i64: 16, 384>}]} {
    %c0 = arith.constant 0 : index
    %c0_0 = arith.constant 0 : index
    %0 = vector.load %arg1[%c0, %c0_0] : memref<16x128xf32, #tpu.memory_space<vmem>>, vector<16x128xf32>
    %c0_1 = arith.constant 0 : index
    %c0_2 = arith.constant 0 : index
    %1 = vector.load %arg3[%c0_1, %c0_2] : memref<128x128xf32, #tpu.memory_space<vmem>>, vector<128x128xf32>
    %cst = arith.constant dense<0.000000e+00> : vector<16x128xf32>
    %2 = tpu.matmul %0, %1, %cst {dimension_numbers = #tpu.dot_dimension_numbers<[1], [0], [0], [1], [0, 0, 1, 1], [], []>} : vector<16x128xf32>, vector<128x128xf32>, vector<16x128xf32> -> vector<16x128xf32>
    %c0_3 = arith.constant 0 : index
    %c0_4 = arith.constant 0 : index
    %3 = vector.load %arg4[%c0_3, %c0_4] : memref<1x128xf32, #tpu.memory_space<vmem>>, vector<1x128xf32>
    %4 = vector.broadcast %3 : vector<1x128xf32> to vector<16x128xf32>
    %5 = arith.addf %2, %4 : vector<16x128xf32>
    %cst_5 = arith.constant 0.000000e+00 : f32
    %6 = vector.broadcast %cst_5 : f32 to vector<16x128xf32>
    %7 = arith.maximumf %5, %6 : vector<16x128xf32>
    %c0_6 = arith.constant 0 : index
    %c0_7 = arith.constant 0 : index
    %8 = vector.load %arg5[%c0_6, %c0_7] : memref<128x128xf32, #tpu.memory_space<vmem>>, vector<128x128xf32>
    %cst_8 = arith.constant dense<0.000000e+00> : vector<16x128xf32>
    %9 = tpu.matmul %7, %8, %cst_8 {dimension_numbers = #tpu.dot_dimension_numbers<[1], [0], [0], [1], [0, 0, 1, 1], [], []>} : vector<16x128xf32>, vector<128x128xf32>, vector<16x128xf32> -> vector<16x128xf32>
    %c0_9 = arith.constant 0 : index
    %c0_10 = arith.constant 0 : index
    %10 = vector.load %arg6[%c0_9, %c0_10] : memref<1x128xf32, #tpu.memory_space<vmem>>, vector<1x128xf32>
    %11 = vector.broadcast %10 : vector<1x128xf32> to vector<16x128xf32>
    %12 = arith.addf %9, %11 : vector<16x128xf32>
    %cst_11 = arith.constant 0.000000e+00 : f32
    %13 = vector.broadcast %cst_11 : f32 to vector<16x128xf32>
    %14 = arith.maximumf %12, %13 : vector<16x128xf32>
    %c0_12 = arith.constant 0 : index
    %c0_13 = arith.constant 0 : index
    %15 = vector.load %arg7[%c0_12, %c0_13] : memref<128x256xf32, #tpu.memory_space<vmem>>, vector<128x256xf32>
    %cst_14 = arith.constant dense<0.000000e+00> : vector<16x256xf32>
    %16 = tpu.matmul %14, %15, %cst_14 {dimension_numbers = #tpu.dot_dimension_numbers<[1], [0], [0], [1], [0, 0, 1, 1], [], []>} : vector<16x128xf32>, vector<128x256xf32>, vector<16x256xf32> -> vector<16x256xf32>
    %c0_15 = arith.constant 0 : index
    %c0_16 = arith.constant 0 : index
    %17 = vector.load %arg8[%c0_15, %c0_16] : memref<1x256xf32, #tpu.memory_space<vmem>>, vector<1x256xf32>
    %18 = vector.broadcast %17 : vector<1x256xf32> to vector<16x256xf32>
    %19 = arith.addf %16, %18 : vector<16x256xf32>
    %20 = vector.extract_strided_slice %19 {offsets = [0, 0], sizes = [16, 128], strides = [1, 1]} : vector<16x256xf32> to vector<16x128xf32>
    %21 = vector.extract_strided_slice %19 {offsets = [0, 128], sizes = [16, 128], strides = [1, 1]} : vector<16x256xf32> to vector<16x128xf32>
    %cst_17 = arith.constant 1.000000e+01 : f32
    %22 = vector.broadcast %cst_17 : f32 to vector<16x128xf32>
    %23 = arith.minimumf %21, %22 : vector<16x128xf32>
    %c0_18 = arith.constant 0 : index
    %c0_19 = arith.constant 0 : index
    %24 = vector.load %arg2[%c0_18, %c0_19] : memref<16x128xf32, #tpu.memory_space<vmem>>, vector<16x128xf32>
    %25 = math.exp %23 : vector<16x128xf32>
    %26 = arith.mulf %24, %25 : vector<16x128xf32>
    %27 = arith.addf %20, %26 : vector<16x128xf32>
    %c0_20 = arith.constant 0 : index
    %c0_21 = arith.constant 0 : index
    %28 = vector.load %arg9[%c0_20, %c0_21] : memref<16x384xf32, #tpu.memory_space<vmem>>, vector<16x128xf32>
    tpu.vector_store %arg9[%c0_20, %c0_21], %27 {strides = array<i32>} : memref<16x384xf32, #tpu.memory_space<vmem>>, vector<16x128xf32>,
    %c0_22 = arith.constant 0 : index
    %c128 = arith.constant 128 : index
    %29 = vector.load %arg9[%c0_22, %c128] : memref<16x384xf32, #tpu.memory_space<vmem>>, vector<16x128xf32>
    tpu.vector_store %arg9[%c0_22, %c128], %20 {strides = array<i32>} : memref<16x384xf32, #tpu.memory_space<vmem>>, vector<16x128xf32>,
    %c0_23 = arith.constant 0 : index
    %c256 = arith.constant 256 : index
    %30 = vector.load %arg9[%c0_23, %c256] : memref<16x384xf32, #tpu.memory_space<vmem>>, vector<16x128xf32>
    tpu.vector_store %arg9[%c0_23, %c256], %23 {strides = array<i32>} : memref<16x384xf32, #tpu.memory_space<vmem>>, vector<16x128xf32>,
    return
  }
  func.func @transform_0(%arg0: i32) -> (i32, i32) {
    %c0_i32 = arith.constant 0 : i32
    %c0_i32_0 = arith.constant 0 : i32
    return %arg0, %c0_i32 : i32, i32
  }
  func.func @transform_1(%arg0: i32) -> (i32, i32) {
    %c0_i32 = arith.constant 0 : i32
    %c0_i32_0 = arith.constant 0 : i32
    return %arg0, %c0_i32 : i32, i32
  }
  func.func @transform_2(%arg0: i32) -> (i32, i32) {
    %c0_i32 = arith.constant 0 : i32
    %c0_i32_0 = arith.constant 0 : i32
    %c0_i32_1 = arith.constant 0 : i32
    return %c0_i32, %c0_i32_0 : i32, i32
  }
  func.func @transform_3(%arg0: i32) -> (i32, i32) {
    %c0_i32 = arith.constant 0 : i32
    %c0_i32_0 = arith.constant 0 : i32
    %c0_i32_1 = arith.constant 0 : i32
    return %c0_i32, %c0_i32_0 : i32, i32
  }
  func.func @transform_4(%arg0: i32) -> (i32, i32) {
    %c0_i32 = arith.constant 0 : i32
    %c0_i32_0 = arith.constant 0 : i32
    %c0_i32_1 = arith.constant 0 : i32
    return %c0_i32, %c0_i32_0 : i32, i32
  }
  func.func @transform_5(%arg0: i32) -> (i32, i32) {
    %c0_i32 = arith.constant 0 : i32
    %c0_i32_0 = arith.constant 0 : i32
    %c0_i32_1 = arith.constant 0 : i32
    return %c0_i32, %c0_i32_0 : i32, i32
  }
  func.func @transform_6(%arg0: i32) -> (i32, i32) {
    %c0_i32 = arith.constant 0 : i32
    %c0_i32_0 = arith.constant 0 : i32
    %c0_i32_1 = arith.constant 0 : i32
    return %c0_i32, %c0_i32_0 : i32, i32
  }
  func.func @transform_7(%arg0: i32) -> (i32, i32) {
    %c0_i32 = arith.constant 0 : i32
    %c0_i32_0 = arith.constant 0 : i32
    %c0_i32_1 = arith.constant 0 : i32
    return %c0_i32, %c0_i32_0 : i32, i32
  }
  func.func @transform_8(%arg0: i32) -> (i32, i32) {
    %c0_i32 = arith.constant 0 : i32
    %c0_i32_0 = arith.constant 0 : i32
    return %arg0, %c0_i32 : i32, i32
  }
}

</mosaic_0001>

<llo_original>
// kernel: tpu_custom_call.1
$region0: #{tpu_custom_call.1}
  #allocation0 [shape = 'u32[]', space=smem, size = 0x4, offset = 0x4, fixed_abs, tag = 'smem constant byte address 0x4 - core index']
  #allocation1 [shape = 'u32[144,128]{1,0:T(1,128)}', space=vmem, size = 0x12000, scoped, tag = 'internal scratch']
  %s0 = inlined_call_operand.hbm [shape: f32[16,128], index: 0, kind: input, shape index: {}]
  %s1 = inlined_call_operand.hbm [shape: f32[16,128], index: 1, kind: input, shape index: {}]
  %s2 = inlined_call_operand.hbm [shape: f32[128,128], index: 2, kind: input, shape index: {}]
  %s3 = inlined_call_operand.vmem [shape: f32[1,128], index: 3, kind: input, shape index: {}]
  %s4 = inlined_call_operand.hbm [shape: f32[128,128], index: 4, kind: input, shape index: {}]
  %s5 = inlined_call_operand.vmem [shape: f32[1,128], index: 5, kind: input, shape index: {}]
  %s6 = inlined_call_operand.hbm [shape: f32[128,256], index: 6, kind: input, shape index: {}]
  %s7 = inlined_call_operand.vmem [shape: f32[1,256], index: 7, kind: input, shape index: {}]
  %s8 = inlined_call_operand.hbm [shape: f32[16,384], index: 8, kind: output, shape index: {}]
  %s9 = sld [smem:[#allocation0]]
  $region62: #{tpu_custom_call.1} parent=0
    _
  %s11 = ssub.s32 1, %s9
  %s12 = scalar_select 0, %s11, %s9
  $region1: #{tpu_custom_call.1} parent=0
    #allocation2 [shape = 'u8[8192]{0}', space=vmem, size = 0x2000, scoped, tag = 'input window, operand 0, single buffered']
    #allocation3 [shape = 's32[1]{0}', space=sflag, size = 0x4, scoped, tag = 'scoped memory for tpu_custom_call.1']
    #allocation4 [shape = 's32[1]{0}', space=sflag, size = 0x4, scoped, tag = 'scoped memory for tpu_custom_call.1']
    #allocation5 [shape = 'u8[8192]{0}', space=vmem, size = 0x2000, scoped, tag = 'input window, operand 1, single buffered']
    #allocation6 [shape = 's32[1]{0}', space=sflag, size = 0x4, scoped, tag = 'scoped memory for tpu_custom_call.1']
    #allocation7 [shape = 'u8[65536]{0}', space=vmem, size = 0x10000, scoped, tag = 'input window, operand 2, single buffered']
    #allocation8 [shape = 'u8[65536]{0}', space=vmem, size = 0x10000, scoped, tag = 'input window, operand 4, single buffered']
    #allocation9 [shape = 's32[1]{0}', space=sflag, size = 0x4, scoped, tag = 'scoped memory for tpu_custom_call.1']
    #allocation10 [shape = 'u8[131072]{0}', space=vmem, size = 0x20000, scoped, tag = 'input window, operand 6, single buffered']
    #allocation11 [shape = 'u8[24576]{0}', space=vmem, size = 0x6000, scoped, tag = 'output window, operand 0, single buffered']
    %13 = vsyncpa [#allocation3], 0
    %14 = vsyncpa [#allocation6], 0
    %15 = vsyncpa [#allocation9], 0
    %16 = vsyncpa [#allocation4], 0
    // Predicated region
    $region2: #{tpu_custom_call.1} parent=1 // pred_check
      _
    $region3: #{tpu_custom_call.1} parent=1 // pred_check_branch
      %18 = sbr.rel (0) target = $region5
    $region4: #{tpu_custom_call.1} parent=1 // pred_region
      %s20 = ssub.s32 256, 256
      %21 = vsyncadd [#allocation3], %s20
      %s22 = sshll.u32 [#allocation2], 4
      %s23 = int_to_ptr.vmem [resolvable:$true] %s22
      %28 = dma.hbm_to_vmem [thread:$0]  %s0, 256, %s23, [#allocation3], 128, 128, 8
    $region5: #{tpu_custom_call.1} parent=1 // pred_fallthru
      _
    // Predicated region
    $region6: #{tpu_custom_call.1} parent=1 // pred_check
      _
    $region7: #{tpu_custom_call.1} parent=1 // pred_check_branch
      %30 = sbr.rel (0) target = $region9
    $region8: #{tpu_custom_call.1} parent=1 // pred_region
      %s32 = ssub.s32 256, 256
      %33 = vsyncadd [#allocation6], %s32
      %s34 = sshll.u32 [#allocation5], 4
      %s35 = int_to_ptr.vmem [resolvable:$true] %s34
      %40 = dma.hbm_to_vmem [thread:$0]  %s1, 256, %s35, [#allocation6], 128, 128, 8
    $region9: #{tpu_custom_call.1} parent=1 // pred_fallthru
      _
    // Predicated region
    $region10: #{tpu_custom_call.1} parent=1 // pred_check
      _
    $region11: #{tpu_custom_call.1} parent=1 // pred_check_branch
      %42 = sbr.rel (0) target = $region13
    $region12: #{tpu_custom_call.1} parent=1 // pred_region
      %s44 = ssub.s32 2048, 2048
      %45 = vsyncadd [#allocation6], %s44
      %s46 = sshll.u32 [#allocation7], 4
      %s47 = int_to_ptr.vmem [resolvable:$true] %s46
      %52 = dma.hbm_to_vmem [thread:$0]  %s2, 2048, %s47, [#allocation6], 128, 128, 8
    $region13: #{tpu_custom_call.1} parent=1 // pred_fallthru
      _
    // Predicated region
    $region14: #{tpu_custom_call.1} parent=1 // pred_check
      _
    $region15: #{tpu_custom_call.1} parent=1 // pred_check_branch
      %54 = sbr.rel (0) target = $region17
    $region16: #{tpu_custom_call.1} parent=1 // pred_region
      _
    $region17: #{tpu_custom_call.1} parent=1 // pred_fallthru
      _
    // Predicated region
    $region18: #{tpu_custom_call.1} parent=1 // pred_check
      _
    $region19: #{tpu_custom_call.1} parent=1 // pred_check_branch
      %56 = sbr.rel (0) target = $region21
    $region20: #{tpu_custom_call.1} parent=1 // pred_region
      %s58 = ssub.s32 2048, 2048
      %59 = vsyncadd [#allocation9], %s58
      %s60 = sshll.u32 [#allocation8], 4
      %s61 = int_to_ptr.vmem [resolvable:$true] %s60
      %66 = dma.hbm_to_vmem [thread:$0]  %s4, 2048, %s61, [#allocation9], 128, 128, 8
    $region21: #{tpu_custom_call.1} parent=1 // pred_fallthru
      _
    // Predicated region
    $region22: #{tpu_custom_call.1} parent=1 // pred_check
      _
    $region23: #{tpu_custom_call.1} parent=1 // pred_check_branch
      %68 = sbr.rel (0) target = $region25
    $region24: #{tpu_custom_call.1} parent=1 // pred_region
      _
    $region25: #{tpu_custom_call.1} parent=1 // pred_fallthru
      _
    // Predicated region
    $region26: #{tpu_custom_call.1} parent=1 // pred_check
      _
    $region27: #{tpu_custom_call.1} parent=1 // pred_check_branch
      %70 = sbr.rel (0) target = $region29
    $region28: #{tpu_custom_call.1} parent=1 // pred_region
      %s72 = ssub.s32 4096, 4096
      %73 = vsyncadd [#allocation9], %s72
      %s74 = sshll.u32 [#allocation10], 4
      %s75 = int_to_ptr.vmem [resolvable:$true] %s74
      %80 = dma.hbm_to_vmem [thread:$0]  %s6, 4096, %s75, [#allocation9], 256, 256, 16
    $region29: #{tpu_custom_call.1} parent=1 // pred_fallthru
      _
    // Predicated region
    $region30: #{tpu_custom_call.1} parent=1 // pred_check
      _
    $region31: #{tpu_custom_call.1} parent=1 // pred_check_branch
      %82 = sbr.rel (0) target = $region33
    $region32: #{tpu_custom_call.1} parent=1 // pred_region
      _
    $region33: #{tpu_custom_call.1} parent=1 // pred_fallthru
      _
    // Predicated region
    $region34: #{tpu_custom_call.1} parent=1 // pred_check
      _
    $region35: #{tpu_custom_call.1} parent=1 // pred_check_branch
      %84 = sbr.rel (0) target = $region37
    $region36: #{tpu_custom_call.1} parent=1 // pred_region
      %85 = dma.done [#allocation3], 256
    $region37: #{tpu_custom_call.1} parent=1 // pred_fallthru
      _
    // Predicated region
    $region38: #{tpu_custom_call.1} parent=1 // pred_check
      _
    $region39: #{tpu_custom_call.1} parent=1 // pred_check_branch
      %87 = sbr.rel (0) target = $region41
    $region40: #{tpu_custom_call.1} parent=1 // pred_region
      %88 = dma.done [#allocation6], 256
    $region41: #{tpu_custom_call.1} parent=1 // pred_fallthru
      _
    // Predicated region
    $region42: #{tpu_custom_call.1} parent=1 // pred_check
      _
    $region43: #{tpu_custom_call.1} parent=1 // pred_check_branch
      %90 = sbr.rel (0) target = $region45
    $region44: #{tpu_custom_call.1} parent=1 // pred_region
      %91 = dma.done [#allocation6], 2048
    $region45: #{tpu_custom_call.1} parent=1 // pred_fallthru
      _
    // Predicated region
    $region46: #{tpu_custom_call.1} parent=1 // pred_check
      _
    $region47: #{tpu_custom_call.1} parent=1 // pred_check_branch
      %93 = sbr.rel (0) target = $region49
    $region48: #{tpu_custom_call.1} parent=1 // pred_region
      %94 = dma.done [#allocation9], 2048
    $region49: #{tpu_custom_call.1} parent=1 // pred_fallthru
      _
    // Predicated region
    $region50: #{tpu_custom_call.1} parent=1 // pred_check
      _
    $region51: #{tpu_custom_call.1} parent=1 // pred_check_branch
      %96 = sbr.rel (0) target = $region53
    $region52: #{tpu_custom_call.1} parent=1 // pred_region
      %97 = dma.done [#allocation9], 4096
    $region53: #{tpu_custom_call.1} parent=1 // pred_fallthru
      _
    %v98 = vld [vmem:[#allocation2] sm:$0xff]
    %v99 = vld [vmem:[#allocation2 + $0x8] sm:$0xff]
    %v100 = vld [vmem:[#allocation7] sm:$0xff]
    %v101 = vld [vmem:[#allocation7 + $0x8] sm:$0xff]
    %v102 = vld [vmem:[#allocation7 + $0x10] sm:$0xff]
    %v103 = vld [vmem:[#allocation7 + $0x18] sm:$0xff]
    %v104 = vld [vmem:[#allocation7 + $0x20] sm:$0xff]
    %v105 = vld [vmem:[#allocation7 + $0x28] sm:$0xff]
    %v106 = vld [vmem:[#allocation7 + $0x30] sm:$0xff]
    %v107 = vld [vmem:[#allocation7 + $0x38] sm:$0xff]
    %v108 = vld [vmem:[#allocation7 + $0x40] sm:$0xff]
    %v109 = vld [vmem:[#allocation7 + $0x48] sm:$0xff]
    %v110 = vld [vmem:[#allocation7 + $0x50] sm:$0xff]
    %v111 = vld [vmem:[#allocation7 + $0x58] sm:$0xff]
    %v112 = vld [vmem:[#allocation7 + $0x60] sm:$0xff]
    %v113 = vld [vmem:[#allocation7 + $0x68] sm:$0xff]
    %v114 = vld [vmem:[#allocation7 + $0x70] sm:$0xff]
    %v115 = vld [vmem:[#allocation7 + $0x78] sm:$0xff]
    %v116 = vld [vmem:[%s3] sm:$0x1]
    %v118 = vlaneseq
    %v119 = vshrl.u32 %v118, 7
    %v120 = vsub.s32 0, %v119
    %v121 = vrot.slane %v116, %v120
    %123 = vmatprep.subr.mxu0 0.0
    %124 = vmatpush1.msra.mxu0 %v115
    %125 = vmatprep.subr.mxu0 0.0
    %126 = vmatpush1.msra.mxu0 %v114
    %127 = vmatprep.subr.mxu0 0.0
    %128 = vmatpush1.msra.mxu0 %v113
    %129 = vmatprep.subr.mxu0 0.0
    %130 = vmatpush1.msra.mxu0 %v112
    %131 = vmatprep.subr.mxu0 0.0
    %132 = vmatpush1.msra.mxu0 %v111
    %133 = vmatprep.subr.mxu0 0.0
    %134 = vmatpush1.msra.mxu0 %v110
    %135 = vmatprep.subr.mxu0 0.0
    %136 = vmatpush1.msra.mxu0 %v109
    %137 = vmatprep.subr.mxu0 0.0
    %138 = vmatpush1.msra.mxu0 %v108
    %139 = vmatprep.subr.mxu0 0.0
    %140 = vmatpush1.msra.mxu0 %v107
    %141 = vmatprep.subr.mxu0 0.0
    %142 = vmatpush1.msra.mxu0 %v106
    %143 = vmatprep.subr.mxu0 0.0
    %144 = vmatpush1.msra.mxu0 %v105
    %145 = vmatprep.subr.mxu0 0.0
    %146 = vmatpush1.msra.mxu0 %v104
    %147 = vmatprep.subr.mxu0 0.0
    %148 = vmatpush1.msra.mxu0 %v103
    %149 = vmatprep.subr.mxu0 0.0
    %150 = vmatpush1.msra.mxu0 %v102
    %151 = vmatprep.subr.mxu0 0.0
    %152 = vmatpush1.msra.mxu0 %v101
    %153 = vmatprep.subr.mxu0 0.0
    %154 = vmatpush1.msra.mxu0 %v100
    %155 = vmatprep.subr.mxu0 0.0
    %156 = vmatpush2.msra.mxu0 0.0
    %157 = vmatprep.subr.mxu0 0.0
    %158 = vmatpush2.msra.mxu0 0.0
    %159 = vmatprep.subr.mxu0 0.0
    %160 = vmatpush2.msra.mxu0 0.0
    %161 = vmatprep.subr.mxu0 0.0
    %162 = vmatpush2.msra.mxu0 0.0
    %163 = vmatprep.subr.mxu0 0.0
    %164 = vmatpush2.msra.mxu0 0.0
    %165 = vmatprep.subr.mxu0 0.0
    %166 = vmatpush2.msra.mxu0 0.0
    %167 = vmatprep.subr.mxu0 0.0
    %168 = vmatpush2.msra.mxu0 0.0
    %169 = vmatprep.subr.mxu0 0.0
    %170 = vmatpush2.msra.mxu0 0.0
    %171 = vmatprep.subr.mxu0 0.0
    %172 = vmatpush2.msra.mxu0 0.0
    %173 = vmatprep.subr.mxu0 0.0
    %174 = vmatpush2.msra.mxu0 0.0
    %175 = vmatprep.subr.mxu0 0.0
    %176 = vmatpush2.msra.mxu0 0.0
    %177 = vmatprep.subr.mxu0 0.0
    %178 = vmatpush2.msra.mxu0 0.0
    %179 = vmatprep.subr.mxu0 0.0
    %180 = vmatpush2.msra.mxu0 0.0
    %181 = vmatprep.subr.mxu0 0.0
    %182 = vmatpush2.msra.mxu0 0.0
    %183 = vmatprep.subr.mxu0 0.0
    %184 = vmatpush2.msra.mxu0 0.0
    %185 = vmatprep.subr.mxu0 0.0
    %186 = vmatpush2.msra.mxu0 0.0
    %187 = vmatprep.mubr.f32.mxu0 0.0
    %188 = vmatmul.mubr.f32.gmra.mxu0 %v98
    %v189 = vpop.f32.mrf.mxu0
    %v190 = vadd.f32 %v121, %v189
    %v191 = vpop.f32.mrf.mxu0
    %192 = vmatprep.mubr.f32.mxu0 0.0
    %193 = vmatmul.mubr.f32.gmra.mxu0 %v99
    %v194 = vpop.f32.mrf.mxu0
    %v195 = vadd.f32 %v121, %v194
    %v196 = vpop.f32.mrf.mxu0
    %197 = vdwg.mxu0
    %v198 = vmax.f32 %v190, 0.0
    %v199 = vmax.f32 %v195, 0.0
    %v200 = vld [vmem:[#allocation8] sm:$0xff]
    %v201 = vld [vmem:[#allocation8 + $0x8] sm:$0xff]
    %v202 = vld [vmem:[#allocation8 + $0x10] sm:$0xff]
    %v203 = vld [vmem:[#allocation8 + $0x18] sm:$0xff]
    %v204 = vld [vmem:[#allocation8 + $0x20] sm:$0xff]
    %v205 = vld [vmem:[#allocation8 + $0x28] sm:$0xff]
    %v206 = vld [vmem:[#allocation8 + $0x30] sm:$0xff]
    %v207 = vld [vmem:[#allocation8 + $0x38] sm:$0xff]
    %v208 = vld [vmem:[#allocation8 + $0x40] sm:$0xff]
    %v209 = vld [vmem:[#allocation8 + $0x48] sm:$0xff]
    %v210 = vld [vmem:[#allocation8 + $0x50] sm:$0xff]
    %v211 = vld [vmem:[#allocation8 + $0x58] sm:$0xff]
    %v212 = vld [vmem:[#allocation8 + $0x60] sm:$0xff]
    %v213 = vld [vmem:[#allocation8 + $0x68] sm:$0xff]
    %v214 = vld [vmem:[#allocation8 + $0x70] sm:$0xff]
    %v215 = vld [vmem:[#allocation8 + $0x78] sm:$0xff]
    %v216 = vld [vmem:[%s5] sm:$0x1]
    %v218 = vlaneseq
    %v219 = vshrl.u32 %v218, 7
    %v220 = vsub.s32 0, %v219
    %v221 = vrot.slane %v216, %v220
    %223 = vmatprep.subr.mxu0 0.0
    %224 = vmatpush1.msra.mxu0 %v215
    %225 = vmatprep.subr.mxu0 0.0
    %226 = vmatpush1.msra.mxu0 %v214
    %227 = vmatprep.subr.mxu0 0.0
    %228 = vmatpush1.msra.mxu0 %v213
    %229 = vmatprep.subr.mxu0 0.0
    %230 = vmatpush1.msra.mxu0 %v212
    %231 = vmatprep.subr.mxu0 0.0
    %232 = vmatpush1.msra.mxu0 %v211
    %233 = vmatprep.subr.mxu0 0.0
    %234 = vmatpush1.msra.mxu0 %v210
    %235 = vmatprep.subr.mxu0 0.0
    %236 = vmatpush1.msra.mxu0 %v209
    %237 = vmatprep.subr.mxu0 0.0
    %238 = vmatpush1.msra.mxu0 %v208
    %239 = vmatprep.subr.mxu0 0.0
    %240 = vmatpush1.msra.mxu0 %v207
    %241 = vmatprep.subr.mxu0 0.0
    %242 = vmatpush1.msra.mxu0 %v206
    %243 = vmatprep.subr.mxu0 0.0
    %244 = vmatpush1.msra.mxu0 %v205
    %245 = vmatprep.subr.mxu0 0.0
    %246 = vmatpush1.msra.mxu0 %v204
    %247 = vmatprep.subr.mxu0 0.0
    %248 = vmatpush1.msra.mxu0 %v203
    %249 = vmatprep.subr.mxu0 0.0
    %250 = vmatpush1.msra.mxu0 %v202
    %251 = vmatprep.subr.mxu0 0.0
    %252 = vmatpush1.msra.mxu0 %v201
    %253 = vmatprep.subr.mxu0 0.0
    %254 = vmatpush1.msra.mxu0 %v200
    %255 = vmatprep.subr.mxu0 0.0
    %256 = vmatpush2.msra.mxu0 0.0
    %257 = vmatprep.subr.mxu0 0.0
    %258 = vmatpush2.msra.mxu0 0.0
    %259 = vmatprep.subr.mxu0 0.0
    %260 = vmatpush2.msra.mxu0 0.0
    %261 = vmatprep.subr.mxu0 0.0
    %262 = vmatpush2.msra.mxu0 0.0
    %263 = vmatprep.subr.mxu0 0.0
    %264 = vmatpush2.msra.mxu0 0.0
    %265 = vmatprep.subr.mxu0 0.0
    %266 = vmatpush2.msra.mxu0 0.0
    %267 = vmatprep.subr.mxu0 0.0
    %268 = vmatpush2.msra.mxu0 0.0
    %269 = vmatprep.subr.mxu0 0.0
    %270 = vmatpush2.msra.mxu0 0.0
    %271 = vmatprep.subr.mxu0 0.0
    %272 = vmatpush2.msra.mxu0 0.0
    %273 = vmatprep.subr.mxu0 0.0
    %274 = vmatpush2.msra.mxu0 0.0
    %275 = vmatprep.subr.mxu0 0.0
    %276 = vmatpush2.msra.mxu0 0.0
    %277 = vmatprep.subr.mxu0 0.0
    %278 = vmatpush2.msra.mxu0 0.0
    %279 = vmatprep.subr.mxu0 0.0
    %280 = vmatpush2.msra.mxu0 0.0
    %281 = vmatprep.subr.mxu0 0.0
    %282 = vmatpush2.msra.mxu0 0.0
    %283 = vmatprep.subr.mxu0 0.0
    %284 = vmatpush2.msra.mxu0 0.0
    %285 = vmatprep.subr.mxu0 0.0
    %286 = vmatpush2.msra.mxu0 0.0
    %287 = vmatprep.mubr.f32.mxu0 0.0
    %288 = vmatmul.mubr.f32.gmra.mxu0 %v198
    %v289 = vpop.f32.mrf.mxu0
    %v290 = vadd.f32 %v221, %v289
    %v291 = vpop.f32.mrf.mxu0
    %292 = vmatprep.mubr.f32.mxu0 0.0
    %293 = vmatmul.mubr.f32.gmra.mxu0 %v199
    %v294 = vpop.f32.mrf.mxu0
    %v295 = vadd.f32 %v221, %v294
    %v296 = vpop.f32.mrf.mxu0
    %297 = vdwg.mxu0
    %v298 = vmax.f32 %v290, 0.0
    %v299 = vmax.f32 %v295, 0.0
    %v300 = vld [vmem:[#allocation10] sm:$0xff]
    %v301 = vld [vmem:[#allocation10 + $0x8] sm:$0xff]
    %v302 = vld [vmem:[#allocation10 + $0x10] sm:$0xff]
    %v303 = vld [vmem:[#allocation10 + $0x18] sm:$0xff]
    %v304 = vld [vmem:[#allocation10 + $0x20] sm:$0xff]
    %v305 = vld [vmem:[#allocation10 + $0x28] sm:$0xff]
    %v306 = vld [vmem:[#allocation10 + $0x30] sm:$0xff]
    %v307 = vld [vmem:[#allocation10 + $0x38] sm:$0xff]
    %v308 = vld [vmem:[#allocation10 + $0x40] sm:$0xff]
    %v309 = vld [vmem:[#allocation10 + $0x48] sm:$0xff]
    %v310 = vld [vmem:[#allocation10 + $0x50] sm:$0xff]
    %v311 = vld [vmem:[#allocation10 + $0x58] sm:$0xff]
    %v312 = vld [vmem:[#allocation10 + $0x60] sm:$0xff]
    %v313 = vld [vmem:[#allocation10 + $0x68] sm:$0xff]
    %v314 = vld [vmem:[#allocation10 + $0x70] sm:$0xff]
    %v315 = vld [vmem:[#allocation10 + $0x78] sm:$0xff]
    %v316 = vld [vmem:[#allocation10 + $0x80] sm:$0xff]
    %v317 = vld [vmem:[#allocation10 + $0x88] sm:$0xff]
    %v318 = vld [vmem:[#allocation10 + $0x90] sm:$0xff]
    %v319 = vld [vmem:[#allocation10 + $0x98] sm:$0xff]
    %v320 = vld [vmem:[#allocation10 + $0xa0] sm:$0xff]
    %v321 = vld [vmem:[#allocation10 + $0xa8] sm:$0xff]
    %v322 = vld [vmem:[#allocation10 + $0xb0] sm:$0xff]
    %v323 = vld [vmem:[#allocation10 + $0xb8] sm:$0xff]
    %v324 = vld [vmem:[#allocation10 + $0xc0] sm:$0xff]
    %v325 = vld [vmem:[#allocation10 + $0xc8] sm:$0xff]
    %v326 = vld [vmem:[#allocation10 + $0xd0] sm:$0xff]
    %v327 = vld [vmem:[#allocation10 + $0xd8] sm:$0xff]
    %v328 = vld [vmem:[#allocation10 + $0xe0] sm:$0xff]
    %v329 = vld [vmem:[#allocation10 + $0xe8] sm:$0xff]
    %v330 = vld [vmem:[#allocation10 + $0xf0] sm:$0xff]
    %v331 = vld [vmem:[#allocation10 + $0xf8] sm:$0xff]
    %v332 = vld [vmem:[%s7] sm:$0x3]
    %v334 = vlaneseq
    %v335 = vshrl.u32 %v334, 7
    %v336 = vsub.s32 0, %v335
    %v337 = vrot.slane %v332, %v336
    %v338 = vlaneseq
    %v339 = vshrl.u32 %v338, 7
    %v340 = vsub.s32 1, %v339
    %v341 = vrot.slane %v332, %v340
    %344 = vmatprep.subr.mxu0 %v331
    %345 = vmatpush1.msra.mxu0 %v330
    %346 = vmatprep.subr.mxu0 %v329
    %347 = vmatpush1.msra.mxu0 %v328
    %348 = vmatprep.subr.mxu0 %v327
    %349 = vmatpush1.msra.mxu0 %v326
    %350 = vmatprep.subr.mxu0 %v325
    %351 = vmatpush1.msra.mxu0 %v324
    %352 = vmatprep.subr.mxu0 %v323
    %353 = vmatpush1.msra.mxu0 %v322
    %354 = vmatprep.subr.mxu0 %v321
    %355 = vmatpush1.msra.mxu0 %v320
    %356 = vmatprep.subr.mxu0 %v319
    %357 = vmatpush1.msra.mxu0 %v318
    %358 = vmatprep.subr.mxu0 %v317
    %359 = vmatpush1.msra.mxu0 %v316
    %360 = vmatprep.subr.mxu0 %v315
    %361 = vmatpush1.msra.mxu0 %v314
    %362 = vmatprep.subr.mxu0 %v313
    %363 = vmatpush1.msra.mxu0 %v312
    %364 = vmatprep.subr.mxu0 %v311
    %365 = vmatpush1.msra.mxu0 %v310
    %366 = vmatprep.subr.mxu0 %v309
    %367 = vmatpush1.msra.mxu0 %v308
    %368 = vmatprep.subr.mxu0 %v307
    %369 = vmatpush1.msra.mxu0 %v306
    %370 = vmatprep.subr.mxu0 %v305
    %371 = vmatpush1.msra.mxu0 %v304
    %372 = vmatprep.subr.mxu0 %v303
    %373 = vmatpush1.msra.mxu0 %v302
    %374 = vmatprep.subr.mxu0 %v301
    %375 = vmatpush1.msra.mxu0 %v300
    %376 = vmatprep.subr.mxu0 0.0
    %377 = vmatpush2.msra.mxu0 0.0
    %378 = vmatprep.subr.mxu0 0.0
    %379 = vmatpush2.msra.mxu0 0.0
    %380 = vmatprep.subr.mxu0 0.0
    %381 = vmatpush2.msra.mxu0 0.0
    %382 = vmatprep.subr.mxu0 0.0
    %383 = vmatpush2.msra.mxu0 0.0
    %384 = vmatprep.subr.mxu0 0.0
    %385 = vmatpush2.msra.mxu0 0.0
    %386 = vmatprep.subr.mxu0 0.0
    %387 = vmatpush2.msra.mxu0 0.0
    %388 = vmatprep.subr.mxu0 0.0
    %389 = vmatpush2.msra.mxu0 0.0
    %390 = vmatprep.subr.mxu0 0.0
    %391 = vmatpush2.msra.mxu0 0.0
    %392 = vmatprep.subr.mxu0 0.0
    %393 = vmatpush2.msra.mxu0 0.0
    %394 = vmatprep.subr.mxu0 0.0
    %395 = vmatpush2.msra.mxu0 0.0
    %396 = vmatprep.subr.mxu0 0.0
    %397 = vmatpush2.msra.mxu0 0.0
    %398 = vmatprep.subr.mxu0 0.0
    %399 = vmatpush2.msra.mxu0 0.0
    %400 = vmatprep.subr.mxu0 0.0
    %401 = vmatpush2.msra.mxu0 0.0
    %402 = vmatprep.subr.mxu0 0.0
    %403 = vmatpush2.msra.mxu0 0.0
    %404 = vmatprep.subr.mxu0 0.0
    %405 = vmatpush2.msra.mxu0 0.0
    %406 = vmatprep.subr.mxu0 0.0
    %407 = vmatpush2.msra.mxu0 0.0
    %408 = vmatprep.mubr.f32.mxu0 0.0
    %409 = vmatmul.mubr.f32.gmra.mxu0 %v298
    %v410 = vpop.f32.mrf.mxu0
    %v411 = vadd.f32 %v337, %v410
    %v412 = vpop.f32.mrf.mxu0
    %v413 = vadd.f32 %v341, %v412
    %414 = vmatprep.mubr.f32.mxu0 0.0
    %415 = vmatmul.mubr.f32.gmra.mxu0 %v299
    %v416 = vpop.f32.mrf.mxu0
    %v417 = vadd.f32 %v337, %v416
    %v418 = vpop.f32.mrf.mxu0
    %v419 = vadd.f32 %v341, %v418
    %420 = vdwg.mxu0
    %v421 = vmin.f32 %v413, 10.0
    %v422 = vmin.f32 %v419, 10.0
    %v423 = vld [vmem:[#allocation5] sm:$0xff]
    %v424 = vld [vmem:[#allocation5 + $0x8] sm:$0xff]
    %v425 = vmul.f32 %v421, 1.442695
    %v426 = vpow.pop %v425
    %v427 = vmul.f32 %v422, 1.442695
    %v428 = vpow.pop %v427
    %v429 = vmul.f32 %v423, %v426
    %v430 = vmul.f32 %v424, %v428
    %v431 = vadd.f32 %v411, %v429
    %v432 = vadd.f32 %v417, %v430
    %433 = vst [vmem:[#allocation11] sm:$0xff] %v431
    %434 = vst [vmem:[#allocation11 + $0x18] sm:$0xff] %v432
    %435 = vst [vmem:[#allocation11 + $0x8] sm:$0xff] %v411
    %436 = vst [vmem:[#allocation11 + $0x20] sm:$0xff] %v417
    %437 = vst [vmem:[#allocation11 + $0x10] sm:$0xff] %v421
    %438 = vst [vmem:[#allocation11 + $0x28] sm:$0xff] %v422
    // Predicated region
    $region54: #{tpu_custom_call.1} parent=1 // pred_check
      _
    $region55: #{tpu_custom_call.1} parent=1 // pred_check_branch
      %440 = sbr.rel (0) target = $region57
    $region56: #{tpu_custom_call.1} parent=1 // pred_region
      %s442 = ssub.s32 768, 768
      %443 = vsyncadd [#allocation4], %s442
      %s444 = sshll.u32 [#allocation11], 4
      %s445 = int_to_ptr.vmem [resolvable:$true] %s444
      %450 = dma.vmem_to_hbm [thread:$0]  %s445, 768, %s8, [#allocation4], 384, 384, 24
    $region57: #{tpu_custom_call.1} parent=1 // pred_fallthru
      _
    // Predicated region
    $region58: #{tpu_custom_call.1} parent=1 // pred_check
      _
    $region59: #{tpu_custom_call.1} parent=1 // pred_check_branch
      %452 = sbr.rel (0) target = $region61
    $region60: #{tpu_custom_call.1} parent=1 // pred_region
      %453 = dma.done [#allocation4], 768
    $region61: #{tpu_custom_call.1} parent=1 // pred_fallthru
      _
    %454 = vsyncpa [#allocation3], 1
    %455 = vsyncpa [#allocation6], 1
    %456 = vsyncpa [#allocation9], 1
    %457 = vsyncpa [#allocation4], 1

</llo_original>
